<compile_context>
chip_gen: v5e
topology: v5e:2x2
jax: 0.10.0
libtpu: 0.0.40
codegen_flags: <defaults>
</compile_context>

<pallas_src>
import functools

import numpy as np
import jax
import jax.numpy as jnp
from jax.experimental import pallas as pl
from jax.experimental.pallas import tpu as pltpu

P_CH = 3     # in channels
L_CH = 173   # out channels

# Lane-axis tile. Per-step VMEM footprint ~ (176 + 8) * TILE * 4 B * 2 buffers
# ~ 6 MiB at 4096 -> safe headroom even under v7x's 32 MiB scoped default.
MAX_TILE_HW = 4096


def _round_up(x, m):
    return (x + m - 1) // m * m


def _conv1x1_relu_kernel(w_ref, x_ref, o_ref):
    """w_ref: (L, P) f32 (resident across grid); x_ref: (P, T) f32; o_ref: (L, T)."""
    w = w_ref[...]
    x = x_ref[...]
    # K = P is tiny (3): do the contraction as VPU broadcast multiply-adds.
    y = w[:, 0:1] * x[0:1, :]
    for k in range(1, x_ref.shape[0]):          # static unroll, P is trace-time const
        y = y + w[:, k:k + 1] * x[k:k + 1, :]
    o_ref[...] = jnp.maximum(y, 0.0).astype(o_ref.dtype)


@functools.partial(jax.jit, static_argnums=(2, 3, 4))
def conv1x1_relu(weight, out_t, P, nr1, nc1):
    """weight: (L, P) f32; out_t: anything reshapable to (1, P, nr1, nc1)."""
    hw = nr1 * nc1
    L = weight.shape[0]
    # batch = 1 (as in the module's .view(1, P, nr1, nc1)); flatten spatial to lanes.
    x2d = out_t.reshape(P, hw).astype(jnp.float32)

    tile_hw = min(MAX_TILE_HW, _round_up(hw, 128))
    hw_pad = _round_up(hw, tile_hw)
    if hw_pad != hw:
        x2d = jnp.pad(x2d, ((0, 0), (0, hw_pad - hw)))
    n_tiles = hw_pad // tile_hw

    y2d = pl.pallas_call(
        _conv1x1_relu_kernel,
        out_shape=jax.ShapeDtypeStruct((L, hw_pad), jnp.float32),
        grid=(n_tiles,),
        in_specs=[
            # Weights: same block every step -> stay resident in VMEM.
            pl.BlockSpec((L, P), lambda i: (0, 0)),
            # Input tile i along the lane (H*W) axis.
            pl.BlockSpec((P, tile_hw), lambda i: (0, i)),
        ],
        out_specs=pl.BlockSpec((L, tile_hw), lambda i: (0, i)),
        compiler_params=pltpu.CompilerParams(
            dimension_semantics=("parallel",)),   # shards across TCs on v7x
    )(weight, x2d)

    if hw_pad != hw:
        y2d = y2d[:, :hw]
    return y2d.reshape(1, L, nr1, nc1)


class Endecoder:
    """JAX/Pallas port of the PyTorch Endecoder module."""

    def __init__(self, key, endmembers):
        keys = jax.random.split(key, 6)
        bound = (1.0 / P_CH) ** 0.5
        # Six independent 1x1 conv weights, (L, P) == conv weight[:, :, 0, 0],
        # created once in f32 (no per-call cast on the hot path).
        self.weights = [
            jax.random.uniform(k, (L_CH, P_CH), jnp.float32, -bound, bound)
            for k in keys
        ]
        self.endmembers = list(endmembers)
        # Exact-bytes index of E1..E6 (mirrors torch.equal semantics) built once,
        # so forward() does a single lookup instead of 6 device->host syncs.
        self._bytes_to_idx = {
            self._fingerprint(E): i for i, E in enumerate(self.endmembers)
        }
        # Identity fast path: zero host sync when the caller passes the exact
        # E_i object we hold (ids stay valid because we keep the references).
        self._id_to_idx = {id(E): i for i, E in enumerate(self.endmembers)}

    @staticmethod
    def _fingerprint(arr):
        a = np.asarray(arr)
        return (a.shape, a.dtype.str, a.tobytes())

    def _select(self, endmember):
        idx = self._id_to_idx.get(id(endmember))
        if idx is not None:
            return idx
        idx = self._bytes_to_idx.get(self._fingerprint(endmember))
        if idx is None:
            # TODO(synk): original module returns an undefined `re_out`
            # (UnboundLocalError) when nothing matches; we raise instead.
            raise ValueError("endmember does not match any of E1..E6")
        return idx

    def forward(self, endmember, out_t, P, nr1, nc1):
        return conv1x1_relu(self.weights[self._select(endmember)],
                            out_t, P, nr1, nc1)


if __name__ == "__main__":
    key = jax.random.PRNGKey(0)
    k_e, k_x, k_w, k_x2 = jax.random.split(key, 4)

    P = P_CH

    # Six distinct endmember signature arrays E1..E6.
    endmembers = [
        jax.random.normal(jax.random.fold_in(k_e, i), (L_CH, P), jnp.float32)
        for i in range(6)
    ]
    model = Endecoder(k_w, endmembers)

    # Case 1: 16x16 spatial (H*W = 256, multiple of 128), decoder 3 branch.
    nr1, nc1 = 16, 16
    out_t = jax.random.uniform(k_x, (P * nr1 * nc1,), jnp.float32)
    re_out = jax.block_until_ready(model.forward(endmembers[2], out_t, P, nr1, nc1))

    x = out_t.reshape(1, P, nr1, nc1)
    ref = jnp.maximum(jnp.einsum("lp,bphw->blhw", model.weights[2], x), 0.0)
    assert re_out.shape == (1, L_CH, nr1, nc1)
    assert jnp.allclose(re_out, ref, atol=1e-5, rtol=1e-5)

    # Case 2: 10x12 spatial (H*W = 120, NOT a multiple of 128) -> exercises the
    # lane-padding path; decoder 5 branch.
    nr2, nc2 = 10, 12
    out_t2 = jax.random.uniform(k_x2, (P * nr2 * nc2,), jnp.float32)
    re_out2 = jax.block_until_ready(model.forward(endmembers[4], out_t2, P, nr2, nc2))
    ref2 = jnp.maximum(
        jnp.einsum("lp,bphw->blhw", model.weights[4],
                   out_t2.reshape(1, P, nr2, nc2)), 0.0)
    assert re_out2.shape == (1, L_CH, nr2, nc2)
    assert jnp.allclose(re_out2, ref2, atol=1e-5, rtol=1e-5)

    print("KERNEL_OK")
</pallas_src>

<mosaic_0001>
module attributes {stable_mosaic.version = 11 : i64} {
  func.func @_conv1x1_relu_kernel(%arg0: i32, %arg1: memref<173x3xf32, #tpu.memory_space<vmem>>, %arg2: memref<3x256xf32, #tpu.memory_space<vmem>>, %arg3: memref<173x256xf32, #tpu.memory_space<vmem>>) attributes {dimension_semantics = [#tpu.dimension_semantics<parallel>], iteration_bounds = array<i64: 1>, scalar_prefetch = 0 : i64, scratch_operands = 0 : i64, tpu.core_type = #tpu.core_type<tc>, window_params = [{pipeline_mode = #tpu.pipeline_mode<synchronous>, transform_indices = @transform_0, window_bounds = array<i64: 173, 3>}, {transform_indices = @transform_1, window_bounds = array<i64: 3, 256>}, {transform_indices = @transform_2, window_bounds = array<i64: 173, 256>}]} {
    %c0 = arith.constant 0 : index
    %c0_0 = arith.constant 0 : index
    %0 = vector.load %arg1[%c0, %c0_0] : memref<173x3xf32, #tpu.memory_space<vmem>>, vector<173x3xf32>
    %c0_1 = arith.constant 0 : index
    %c0_2 = arith.constant 0 : index
    %1 = vector.load %arg2[%c0_1, %c0_2] : memref<3x256xf32, #tpu.memory_space<vmem>>, vector<3x256xf32>
    %2 = vector.extract_strided_slice %0 {offsets = [0, 0], sizes = [173, 1], strides = [1, 1]} : vector<173x3xf32> to vector<173x1xf32>
    %3 = vector.extract_strided_slice %1 {offsets = [0, 0], sizes = [1, 256], strides = [1, 1]} : vector<3x256xf32> to vector<1x256xf32>
    %4 = vector.broadcast %2 : vector<173x1xf32> to vector<173x256xf32>
    %5 = vector.broadcast %3 : vector<1x256xf32> to vector<173x256xf32>
    %6 = arith.mulf %4, %5 : vector<173x256xf32>
    %7 = vector.extract_strided_slice %0 {offsets = [0, 1], sizes = [173, 1], strides = [1, 1]} : vector<173x3xf32> to vector<173x1xf32>
    %8 = vector.extract_strided_slice %1 {offsets = [1, 0], sizes = [1, 256], strides = [1, 1]} : vector<3x256xf32> to vector<1x256xf32>
    %9 = vector.broadcast %7 : vector<173x1xf32> to vector<173x256xf32>
    %10 = vector.broadcast %8 : vector<1x256xf32> to vector<173x256xf32>
    %11 = arith.mulf %9, %10 : vector<173x256xf32>
    %12 = arith.addf %6, %11 : vector<173x256xf32>
    %13 = vector.extract_strided_slice %0 {offsets = [0, 2], sizes = [173, 1], strides = [1, 1]} : vector<173x3xf32> to vector<173x1xf32>
    %14 = vector.extract_strided_slice %1 {offsets = [2, 0], sizes = [1, 256], strides = [1, 1]} : vector<3x256xf32> to vector<1x256xf32>
    %15 = vector.broadcast %13 : vector<173x1xf32> to vector<173x256xf32>
    %16 = vector.broadcast %14 : vector<1x256xf32> to vector<173x256xf32>
    %17 = arith.mulf %15, %16 : vector<173x256xf32>
    %18 = arith.addf %12, %17 : vector<173x256xf32>
    %cst = arith.constant 0.000000e+00 : f32
    %19 = vector.broadcast %cst : f32 to vector<173x256xf32>
    %20 = arith.maximumf %18, %19 : vector<173x256xf32>
    %c0_3 = arith.constant 0 : index
    %c0_4 = arith.constant 0 : index
    %21 = vector.load %arg3[%c0_3, %c0_4] : memref<173x256xf32, #tpu.memory_space<vmem>>, vector<173x256xf32>
    tpu.vector_store %arg3[%c0_3, %c0_4], %20 {strides = array<i32>} : memref<173x256xf32, #tpu.memory_space<vmem>>, vector<173x256xf32>,
    return
  }
  func.func @transform_0(%arg0: i32) -> (i32, i32) {
    %c0_i32 = arith.constant 0 : i32
    %c0_i32_0 = arith.constant 0 : i32
    %c0_i32_1 = arith.constant 0 : i32
    return %c0_i32, %c0_i32_0 : i32, i32
  }
  func.func @transform_1(%arg0: i32) -> (i32, i32) {
    %c0_i32 = arith.constant 0 : i32
    %c0_i32_0 = arith.constant 0 : i32
    return %c0_i32, %arg0 : i32, i32
  }
  func.func @transform_2(%arg0: i32) -> (i32, i32) {
    %c0_i32 = arith.constant 0 : i32
    %c0_i32_0 = arith.constant 0 : i32
    return %c0_i32, %arg0 : i32, i32
  }
}

</mosaic_0001>

<llo_original>
// kernel: conv1x1_relu.1
$region0: #{conv1x1_relu.1}
  #allocation0 [shape = 'u32[]', space=smem, size = 0x4, offset = 0x4, fixed_abs, tag = 'smem constant byte address 0x4 - core index']
  #allocation1 [shape = 'u32[72,128]{1,0:T(1,128)}', space=vmem, size = 0x9000, scoped, tag = 'internal scratch']
  %s0 = inlined_call_operand.vmem [shape: f32[173,3], index: 0, kind: input, shape index: {}]
  %s1 = inlined_call_operand.vmem [shape: f32[3,256], index: 1, kind: input, shape index: {}]
  %s2 = inlined_call_operand.vmem [shape: f32[173,256], index: 2, kind: output, shape index: {}]
  %s3 = sld [smem:[#allocation0]]
  $region18: #{conv1x1_relu.1} parent=0
    _
  %s5 = ssub.s32 1, %s3
  %s6 = scalar_select 0, %s5, %s3
  // Predicated region
  $region2: #{conv1x1_relu.1} parent=0 // pred_check
    _
  $region3: #{conv1x1_relu.1} parent=0 // pred_check_branch
    %8 = sbr.rel (0) target = $region5
  $region4: #{conv1x1_relu.1} parent=0 // pred_region
    _
  $region5: #{conv1x1_relu.1} parent=0 // pred_fallthru
    _
  // Predicated region
  $region6: #{conv1x1_relu.1} parent=0 // pred_check
    _
  $region7: #{conv1x1_relu.1} parent=0 // pred_check_branch
    %10 = sbr.rel (0) target = $region9
  $region8: #{conv1x1_relu.1} parent=0 // pred_region
    _
  $region9: #{conv1x1_relu.1} parent=0 // pred_fallthru
    _
  %v11 = vld [vmem:[%s0] sm:$0xff]
  %v12 = vld [vmem:[%s0 + $0x8] sm:$0xff]
  %v13 = vld [vmem:[%s0 + $0x10] sm:$0xff]
  %v14 = vld [vmem:[%s0 + $0x18] sm:$0xff]
  %v15 = vld [vmem:[%s0 + $0x20] sm:$0xff]
  %v16 = vld [vmem:[%s0 + $0x28] sm:$0xff]
  %v17 = vld [vmem:[%s0 + $0x30] sm:$0xff]
  %v18 = vld [vmem:[%s0 + $0x38] sm:$0xff]
  %v19 = vld [vmem:[%s0 + $0x40] sm:$0xff]
  %v20 = vld [vmem:[%s0 + $0x48] sm:$0xff]
  %v21 = vld [vmem:[%s0 + $0x50] sm:$0xff]
  %v22 = vld [vmem:[%s0 + $0x58] sm:$0xff]
  %v23 = vld [vmem:[%s0 + $0x60] sm:$0xff]
  %v24 = vld [vmem:[%s0 + $0x68] sm:$0xff]
  %v25 = vld [vmem:[%s0 + $0x70] sm:$0xff]
  %v26 = vld [vmem:[%s0 + $0x78] sm:$0xff]
  %v27 = vld [vmem:[%s0 + $0x80] sm:$0xff]
  %v28 = vld [vmem:[%s0 + $0x88] sm:$0xff]
  %v29 = vld [vmem:[%s0 + $0x90] sm:$0xff]
  %v30 = vld [vmem:[%s0 + $0x98] sm:$0xff]
  %v31 = vld [vmem:[%s0 + $0xa0] sm:$0xff]
  %v32 = vld [vmem:[%s0 + $0xa8] sm:$0x1f]
  %v33 = vld [vmem:[%s1] sm:$0x77]
  %35 = vset.pattern.permute.xlu0 0
  %36 = vperm.xlu0 %35, %v11
  %v37 = vpop.permute.xlu0 %36
  %40 = vset.pattern.permute.xlu0 0
  %41 = vperm.xlu0 %40, %v12
  %v42 = vpop.permute.xlu0 %41
  %45 = vset.pattern.permute.xlu0 0
  %46 = vperm.xlu0 %45, %v13
  %v47 = vpop.permute.xlu0 %46
  %50 = vset.pattern.permute.xlu0 0
  %51 = vperm.xlu0 %50, %v14
  %v52 = vpop.permute.xlu0 %51
  %55 = vset.pattern.permute.xlu0 0
  %56 = vperm.xlu0 %55, %v15
  %v57 = vpop.permute.xlu0 %56
  %60 = vset.pattern.permute.xlu0 0
  %61 = vperm.xlu0 %60, %v16
  %v62 = vpop.permute.xlu0 %61
  %65 = vset.pattern.permute.xlu0 0
  %66 = vperm.xlu0 %65, %v17
  %v67 = vpop.permute.xlu0 %66
  %70 = vset.pattern.permute.xlu0 0
  %71 = vperm.xlu0 %70, %v18
  %v72 = vpop.permute.xlu0 %71
  %75 = vset.pattern.permute.xlu0 0
  %76 = vperm.xlu0 %75, %v19
  %v77 = vpop.permute.xlu0 %76
  %80 = vset.pattern.permute.xlu0 0
  %81 = vperm.xlu0 %80, %v20
  %v82 = vpop.permute.xlu0 %81
  %85 = vset.pattern.permute.xlu0 0
  %86 = vperm.xlu0 %85, %v21
  %v87 = vpop.permute.xlu0 %86
  %90 = vset.pattern.permute.xlu0 0
  %91 = vperm.xlu0 %90, %v22
  %v92 = vpop.permute.xlu0 %91
  %95 = vset.pattern.permute.xlu0 0
  %96 = vperm.xlu0 %95, %v23
  %v97 = vpop.permute.xlu0 %96
  %100 = vset.pattern.permute.xlu0 0
  %101 = vperm.xlu0 %100, %v24
  %v102 = vpop.permute.xlu0 %101
  %105 = vset.pattern.permute.xlu0 0
  %106 = vperm.xlu0 %105, %v25
  %v107 = vpop.permute.xlu0 %106
  %110 = vset.pattern.permute.xlu0 0
  %111 = vperm.xlu0 %110, %v26
  %v112 = vpop.permute.xlu0 %111
  %115 = vset.pattern.permute.xlu0 0
  %116 = vperm.xlu0 %115, %v27
  %v117 = vpop.permute.xlu0 %116
  %120 = vset.pattern.permute.xlu0 0
  %121 = vperm.xlu0 %120, %v28
  %v122 = vpop.permute.xlu0 %121
  %125 = vset.pattern.permute.xlu0 0
  %126 = vperm.xlu0 %125, %v29
  %v127 = vpop.permute.xlu0 %126
  %130 = vset.pattern.permute.xlu0 0
  %131 = vperm.xlu0 %130, %v30
  %v132 = vpop.permute.xlu0 %131
  %135 = vset.pattern.permute.xlu0 0
  %136 = vperm.xlu0 %135, %v31
  %v137 = vpop.permute.xlu0 %136
  %140 = vset.pattern.permute.xlu0 0
  %141 = vperm.xlu0 %140, %v32
  %v142 = vpop.permute.xlu0 %141
  %v145 = vperm.slane %v33, 0
  %v146 = vperm.slane %v33, 4
  %v149 = vperm.slane %v145, 0
  %v150 = vperm.slane %v146, 0
  %v151 = vmul.f32 %v37, %v149
  %v152 = vmul.f32 %v37, %v150
  %v153 = vmul.f32 %v42, %v149
  %v154 = vmul.f32 %v42, %v150
  %v155 = vmul.f32 %v47, %v149
  %v156 = vmul.f32 %v47, %v150
  %v157 = vmul.f32 %v52, %v149
  %v158 = vmul.f32 %v52, %v150
  %v159 = vmul.f32 %v57, %v149
  %v160 = vmul.f32 %v57, %v150
  %v161 = vmul.f32 %v62, %v149
  %v162 = vmul.f32 %v62, %v150
  %v163 = vmul.f32 %v67, %v149
  %v164 = vmul.f32 %v67, %v150
  %v165 = vmul.f32 %v72, %v149
  %v166 = vmul.f32 %v72, %v150
  %v167 = vmul.f32 %v77, %v149
  %v168 = vmul.f32 %v77, %v150
  %v169 = vmul.f32 %v82, %v149
  %v170 = vmul.f32 %v82, %v150
  %v171 = vmul.f32 %v87, %v149
  %v172 = vmul.f32 %v87, %v150
  %v173 = vmul.f32 %v92, %v149
  %v174 = vmul.f32 %v92, %v150
  %v175 = vmul.f32 %v97, %v149
  %v176 = vmul.f32 %v97, %v150
  %v177 = vmul.f32 %v102, %v149
  %v178 = vmul.f32 %v102, %v150
  %v179 = vmul.f32 %v107, %v149
  %v180 = vmul.f32 %v107, %v150
  %v181 = vmul.f32 %v112, %v149
  %v182 = vmul.f32 %v112, %v150
  %v183 = vmul.f32 %v117, %v149
  %v184 = vmul.f32 %v117, %v150
  %v185 = vmul.f32 %v122, %v149
  %v186 = vmul.f32 %v122, %v150
  %v187 = vmul.f32 %v127, %v149
  %v188 = vmul.f32 %v127, %v150
  %v189 = vmul.f32 %v132, %v149
  %v190 = vmul.f32 %v132, %v150
  %v191 = vmul.f32 %v137, %v149
  %v192 = vmul.f32 %v137, %v150
  %v193 = vmul.f32 %v142, %v149
  %v194 = vmul.f32 %v142, %v150
  %195 = vset.pattern.permute.xlu0 1
  %196 = vperm.xlu0 %195, %v11
  %v197 = vpop.permute.xlu0 %196
  %199 = vset.pattern.permute.xlu0 1
  %200 = vperm.xlu0 %199, %v12
  %v201 = vpop.permute.xlu0 %200
  %203 = vset.pattern.permute.xlu0 1
  %204 = vperm.xlu0 %203, %v13
  %v205 = vpop.permute.xlu0 %204
  %207 = vset.pattern.permute.xlu0 1
  %208 = vperm.xlu0 %207, %v14
  %v209 = vpop.permute.xlu0 %208
  %211 = vset.pattern.permute.xlu0 1
  %212 = vperm.xlu0 %211, %v15
  %v213 = vpop.permute.xlu0 %212
  %215 = vset.pattern.permute.xlu0 1
  %216 = vperm.xlu0 %215, %v16
  %v217 = vpop.permute.xlu0 %216
  %219 = vset.pattern.permute.xlu0 1
  %220 = vperm.xlu0 %219, %v17
  %v221 = vpop.permute.xlu0 %220
  %223 = vset.pattern.permute.xlu0 1
  %224 = vperm.xlu0 %223, %v18
  %v225 = vpop.permute.xlu0 %224
  %227 = vset.pattern.permute.xlu0 1
  %228 = vperm.xlu0 %227, %v19
  %v229 = vpop.permute.xlu0 %228
  %231 = vset.pattern.permute.xlu0 1
  %232 = vperm.xlu0 %231, %v20
  %v233 = vpop.permute.xlu0 %232
  %235 = vset.pattern.permute.xlu0 1
  %236 = vperm.xlu0 %235, %v21
  %v237 = vpop.permute.xlu0 %236
  %239 = vset.pattern.permute.xlu0 1
  %240 = vperm.xlu0 %239, %v22
  %v241 = vpop.permute.xlu0 %240
  %243 = vset.pattern.permute.xlu0 1
  %244 = vperm.xlu0 %243, %v23
  %v245 = vpop.permute.xlu0 %244
  %247 = vset.pattern.permute.xlu0 1
  %248 = vperm.xlu0 %247, %v24
  %v249 = vpop.permute.xlu0 %248
  %251 = vset.pattern.permute.xlu0 1
  %252 = vperm.xlu0 %251, %v25
  %v253 = vpop.permute.xlu0 %252
  %255 = vset.pattern.permute.xlu0 1
  %256 = vperm.xlu0 %255, %v26
  %v257 = vpop.permute.xlu0 %256
  %259 = vset.pattern.permute.xlu0 1
  %260 = vperm.xlu0 %259, %v27
  %v261 = vpop.permute.xlu0 %260
  %263 = vset.pattern.permute.xlu0 1
  %264 = vperm.xlu0 %263, %v28
  %v265 = vpop.permute.xlu0 %264
  %267 = vset.pattern.permute.xlu0 1
  %268 = vperm.xlu0 %267, %v29
  %v269 = vpop.permute.xlu0 %268
  %271 = vset.pattern.permute.xlu0 1
  %272 = vperm.xlu0 %271, %v30
  %v273 = vpop.permute.xlu0 %272
  %275 = vset.pattern.permute.xlu0 1
  %276 = vperm.xlu0 %275, %v31
  %v277 = vpop.permute.xlu0 %276
  %279 = vset.pattern.permute.xlu0 1
  %280 = vperm.xlu0 %279, %v32
  %v281 = vpop.permute.xlu0 %280
  %v283 = vperm.slane %v33, 1
  %v284 = vperm.slane %v33, 5
  %v287 = vperm.slane %v283, 1
  %v288 = vperm.slane %v284, 1
  %v289 = vmul.f32 %v197, %v287
  %v290 = vmul.f32 %v197, %v288
  %v291 = vmul.f32 %v201, %v287
  %v292 = vmul.f32 %v201, %v288
  %v293 = vmul.f32 %v205, %v287
  %v294 = vmul.f32 %v205, %v288
  %v295 = vmul.f32 %v209, %v287
  %v296 = vmul.f32 %v209, %v288
  %v297 = vmul.f32 %v213, %v287
  %v298 = vmul.f32 %v213, %v288
  %v299 = vmul.f32 %v217, %v287
  %v300 = vmul.f32 %v217, %v288
  %v301 = vmul.f32 %v221, %v287
  %v302 = vmul.f32 %v221, %v288
  %v303 = vmul.f32 %v225, %v287
  %v304 = vmul.f32 %v225, %v288
  %v305 = vmul.f32 %v229, %v287
  %v306 = vmul.f32 %v229, %v288
  %v307 = vmul.f32 %v233, %v287
  %v308 = vmul.f32 %v233, %v288
  %v309 = vmul.f32 %v237, %v287
  %v310 = vmul.f32 %v237, %v288
  %v311 = vmul.f32 %v241, %v287
  %v312 = vmul.f32 %v241, %v288
  %v313 = vmul.f32 %v245, %v287
  %v314 = vmul.f32 %v245, %v288
  %v315 = vmul.f32 %v249, %v287
  %v316 = vmul.f32 %v249, %v288
  %v317 = vmul.f32 %v253, %v287
  %v318 = vmul.f32 %v253, %v288
  %v319 = vmul.f32 %v257, %v287
  %v320 = vmul.f32 %v257, %v288
  %v321 = vmul.f32 %v261, %v287
  %v322 = vmul.f32 %v261, %v288
  %v323 = vmul.f32 %v265, %v287
  %v324 = vmul.f32 %v265, %v288
  %v325 = vmul.f32 %v269, %v287
  %v326 = vmul.f32 %v269, %v288
  %v327 = vmul.f32 %v273, %v287
  %v328 = vmul.f32 %v273, %v288
  %v329 = vmul.f32 %v277, %v287
  %v330 = vmul.f32 %v277, %v288
  %v331 = vmul.f32 %v281, %v287
  %v332 = vmul.f32 %v281, %v288
  %v333 = vadd.f32 %v151, %v289
  %v334 = vadd.f32 %v152, %v290
  %v335 = vadd.f32 %v153, %v291
  %v336 = vadd.f32 %v154, %v292
  %v337 = vadd.f32 %v155, %v293
  %v338 = vadd.f32 %v156, %v294
  %v339 = vadd.f32 %v157, %v295
  %v340 = vadd.f32 %v158, %v296
  %v341 = vadd.f32 %v159, %v297
  %v342 = vadd.f32 %v160, %v298
  %v343 = vadd.f32 %v161, %v299
  %v344 = vadd.f32 %v162, %v300
  %v345 = vadd.f32 %v163, %v301
  %v346 = vadd.f32 %v164, %v302
  %v347 = vadd.f32 %v165, %v303
  %v348 = vadd.f32 %v166, %v304
  %v349 = vadd.f32 %v167, %v305
  %v350 = vadd.f32 %v168, %v306
  %v351 = vadd.f32 %v169, %v307
  %v352 = vadd.f32 %v170, %v308
  %v353 = vadd.f32 %v171, %v309
  %v354 = vadd.f32 %v172, %v310
  %v355 = vadd.f32 %v173, %v311
  %v356 = vadd.f32 %v174, %v312
  %v357 = vadd.f32 %v175, %v313
  %v358 = vadd.f32 %v176, %v314
  %v359 = vadd.f32 %v177, %v315
  %v360 = vadd.f32 %v178, %v316
  %v361 = vadd.f32 %v179, %v317
  %v362 = vadd.f32 %v180, %v318
  %v363 = vadd.f32 %v181, %v319
  %v364 = vadd.f32 %v182, %v320
  %v365 = vadd.f32 %v183, %v321
  %v366 = vadd.f32 %v184, %v322
  %v367 = vadd.f32 %v185, %v323
  %v368 = vadd.f32 %v186, %v324
  %v369 = vadd.f32 %v187, %v325
  %v370 = vadd.f32 %v188, %v326
  %v371 = vadd.f32 %v189, %v327
  %v372 = vadd.f32 %v190, %v328
  %v373 = vadd.f32 %v191, %v329
  %v374 = vadd.f32 %v192, %v330
  %v375 = vadd.f32 %v193, %v331
  %v376 = vadd.f32 %v194, %v332
  %377 = vset.pattern.permute.xlu0 2
  %378 = vperm.xlu0 %377, %v11
  %v379 = vpop.permute.xlu0 %378
  %381 = vset.pattern.permute.xlu0 2
  %382 = vperm.xlu0 %381, %v12
  %v383 = vpop.permute.xlu0 %382
  %385 = vset.pattern.permute.xlu0 2
  %386 = vperm.xlu0 %385, %v13
  %v387 = vpop.permute.xlu0 %386
  %389 = vset.pattern.permute.xlu0 2
  %390 = vperm.xlu0 %389, %v14
  %v391 = vpop.permute.xlu0 %390
  %393 = vset.pattern.permute.xlu0 2
  %394 = vperm.xlu0 %393, %v15
  %v395 = vpop.permute.xlu0 %394
  %397 = vset.pattern.permute.xlu0 2
  %398 = vperm.xlu0 %397, %v16
  %v399 = vpop.permute.xlu0 %398
  %401 = vset.pattern.permute.xlu0 2
  %402 = vperm.xlu0 %401, %v17
  %v403 = vpop.permute.xlu0 %402
  %405 = vset.pattern.permute.xlu0 2
  %406 = vperm.xlu0 %405, %v18
  %v407 = vpop.permute.xlu0 %406
  %409 = vset.pattern.permute.xlu0 2
  %410 = vperm.xlu0 %409, %v19
  %v411 = vpop.permute.xlu0 %410
  %413 = vset.pattern.permute.xlu0 2
  %414 = vperm.xlu0 %413, %v20
  %v415 = vpop.permute.xlu0 %414
  %417 = vset.pattern.permute.xlu0 2
  %418 = vperm.xlu0 %417, %v21
  %v419 = vpop.permute.xlu0 %418
  %421 = vset.pattern.permute.xlu0 2
  %422 = vperm.xlu0 %421, %v22
  %v423 = vpop.permute.xlu0 %422
  %425 = vset.pattern.permute.xlu0 2
  %426 = vperm.xlu0 %425, %v23
  %v427 = vpop.permute.xlu0 %426
  %429 = vset.pattern.permute.xlu0 2
  %430 = vperm.xlu0 %429, %v24
  %v431 = vpop.permute.xlu0 %430
  %433 = vset.pattern.permute.xlu0 2
  %434 = vperm.xlu0 %433, %v25
  %v435 = vpop.permute.xlu0 %434
  %437 = vset.pattern.permute.xlu0 2
  %438 = vperm.xlu0 %437, %v26
  %v439 = vpop.permute.xlu0 %438
  %441 = vset.pattern.permute.xlu0 2
  %442 = vperm.xlu0 %441, %v27
  %v443 = vpop.permute.xlu0 %442
  %445 = vset.pattern.permute.xlu0 2
  %446 = vperm.xlu0 %445, %v28
  %v447 = vpop.permute.xlu0 %446
  %449 = vset.pattern.permute.xlu0 2
  %450 = vperm.xlu0 %449, %v29
  %v451 = vpop.permute.xlu0 %450
  %453 = vset.pattern.permute.xlu0 2
  %454 = vperm.xlu0 %453, %v30
  %v455 = vpop.permute.xlu0 %454
  %457 = vset.pattern.permute.xlu0 2
  %458 = vperm.xlu0 %457, %v31
  %v459 = vpop.permute.xlu0 %458
  %461 = vset.pattern.permute.xlu0 2
  %462 = vperm.xlu0 %461, %v32
  %v463 = vpop.permute.xlu0 %462
  %v465 = vperm.slane %v33, 2
  %v466 = vperm.slane %v33, 6
  %v469 = vperm.slane %v465, 2
  %v470 = vperm.slane %v466, 2
  %v471 = vmul.f32 %v379, %v469
  %v472 = vmul.f32 %v379, %v470
  %v473 = vmul.f32 %v383, %v469
  %v474 = vmul.f32 %v383, %v470
  %v475 = vmul.f32 %v387, %v469
  %v476 = vmul.f32 %v387, %v470
  %v477 = vmul.f32 %v391, %v469
  %v478 = vmul.f32 %v391, %v470
  %v479 = vmul.f32 %v395, %v469
  %v480 = vmul.f32 %v395, %v470
  %v481 = vmul.f32 %v399, %v469
  %v482 = vmul.f32 %v399, %v470
  %v483 = vmul.f32 %v403, %v469
  %v484 = vmul.f32 %v403, %v470
  %v485 = vmul.f32 %v407, %v469
  %v486 = vmul.f32 %v407, %v470
  %v487 = vmul.f32 %v411, %v469
  %v488 = vmul.f32 %v411, %v470
  %v489 = vmul.f32 %v415, %v469
  %v490 = vmul.f32 %v415, %v470
  %v491 = vmul.f32 %v419, %v469
  %v492 = vmul.f32 %v419, %v470
  %v493 = vmul.f32 %v423, %v469
  %v494 = vmul.f32 %v423, %v470
  %v495 = vmul.f32 %v427, %v469
  %v496 = vmul.f32 %v427, %v470
  %v497 = vmul.f32 %v431, %v469
  %v498 = vmul.f32 %v431, %v470
  %v499 = vmul.f32 %v435, %v469
  %v500 = vmul.f32 %v435, %v470
  %v501 = vmul.f32 %v439, %v469
  %v502 = vmul.f32 %v439, %v470
  %v503 = vmul.f32 %v443, %v469
  %v504 = vmul.f32 %v443, %v470
  %v505 = vmul.f32 %v447, %v469
  %v506 = vmul.f32 %v447, %v470
  %v507 = vmul.f32 %v451, %v469
  %v508 = vmul.f32 %v451, %v470
  %v509 = vmul.f32 %v455, %v469
  %v510 = vmul.f32 %v455, %v470
  %v511 = vmul.f32 %v459, %v469
  %v512 = vmul.f32 %v459, %v470
  %v513 = vmul.f32 %v463, %v469
  %v514 = vmul.f32 %v463, %v470
  %v515 = vadd.f32 %v333, %v471
  %v516 = vadd.f32 %v334, %v472
  %v517 = vadd.f32 %v335, %v473
  %v518 = vadd.f32 %v336, %v474
  %v519 = vadd.f32 %v337, %v475
  %v520 = vadd.f32 %v338, %v476
  %v521 = vadd.f32 %v339, %v477
  %v522 = vadd.f32 %v340, %v478
  %v523 = vadd.f32 %v341, %v479
  %v524 = vadd.f32 %v342, %v480
  %v525 = vadd.f32 %v343, %v481
  %v526 = vadd.f32 %v344, %v482
  %v527 = vadd.f32 %v345, %v483
  %v528 = vadd.f32 %v346, %v484
  %v529 = vadd.f32 %v347, %v485
  %v530 = vadd.f32 %v348, %v486
  %v531 = vadd.f32 %v349, %v487
  %v532 = vadd.f32 %v350, %v488
  %v533 = vadd.f32 %v351, %v489
  %v534 = vadd.f32 %v352, %v490
  %v535 = vadd.f32 %v353, %v491
  %v536 = vadd.f32 %v354, %v492
  %v537 = vadd.f32 %v355, %v493
  %v538 = vadd.f32 %v356, %v494
  %v539 = vadd.f32 %v357, %v495
  %v540 = vadd.f32 %v358, %v496
  %v541 = vadd.f32 %v359, %v497
  %v542 = vadd.f32 %v360, %v498
  %v543 = vadd.f32 %v361, %v499
  %v544 = vadd.f32 %v362, %v500
  %v545 = vadd.f32 %v363, %v501
  %v546 = vadd.f32 %v364, %v502
  %v547 = vadd.f32 %v365, %v503
  %v548 = vadd.f32 %v366, %v504
  %v549 = vadd.f32 %v367, %v505
  %v550 = vadd.f32 %v368, %v506
  %v551 = vadd.f32 %v369, %v507
  %v552 = vadd.f32 %v370, %v508
  %v553 = vadd.f32 %v371, %v509
  %v554 = vadd.f32 %v372, %v510
  %v555 = vadd.f32 %v373, %v511
  %v556 = vadd.f32 %v374, %v512
  %v557 = vadd.f32 %v375, %v513
  %v558 = vadd.f32 %v376, %v514
  %v559 = vmax.f32 %v515, 0.0
  %v560 = vmax.f32 %v516, 0.0
  %v561 = vmax.f32 %v517, 0.0
  %v562 = vmax.f32 %v518, 0.0
  %v563 = vmax.f32 %v519, 0.0
  %v564 = vmax.f32 %v520, 0.0
  %v565 = vmax.f32 %v521, 0.0
  %v566 = vmax.f32 %v522, 0.0
  %v567 = vmax.f32 %v523, 0.0
  %v568 = vmax.f32 %v524, 0.0
  %v569 = vmax.f32 %v525, 0.0
  %v570 = vmax.f32 %v526, 0.0
  %v571 = vmax.f32 %v527, 0.0
  %v572 = vmax.f32 %v528, 0.0
  %v573 = vmax.f32 %v529, 0.0
  %v574 = vmax.f32 %v530, 0.0
  %v575 = vmax.f32 %v531, 0.0
  %v576 = vmax.f32 %v532, 0.0
  %v577 = vmax.f32 %v533, 0.0
  %v578 = vmax.f32 %v534, 0.0
  %v579 = vmax.f32 %v535, 0.0
  %v580 = vmax.f32 %v536, 0.0
  %v581 = vmax.f32 %v537, 0.0
  %v582 = vmax.f32 %v538, 0.0
  %v583 = vmax.f32 %v539, 0.0
  %v584 = vmax.f32 %v540, 0.0
  %v585 = vmax.f32 %v541, 0.0
  %v586 = vmax.f32 %v542, 0.0
  %v587 = vmax.f32 %v543, 0.0
  %v588 = vmax.f32 %v544, 0.0
  %v589 = vmax.f32 %v545, 0.0
  %v590 = vmax.f32 %v546, 0.0
  %v591 = vmax.f32 %v547, 0.0
  %v592 = vmax.f32 %v548, 0.0
  %v593 = vmax.f32 %v549, 0.0
  %v594 = vmax.f32 %v550, 0.0
  %v595 = vmax.f32 %v551, 0.0
  %v596 = vmax.f32 %v552, 0.0
  %v597 = vmax.f32 %v553, 0.0
  %v598 = vmax.f32 %v554, 0.0
  %v599 = vmax.f32 %v555, 0.0
  %v600 = vmax.f32 %v556, 0.0
  %v601 = vmax.f32 %v557, 0.0
  %v602 = vmax.f32 %v558, 0.0
  %603 = vst [vmem:[%s2] sm:$0xff] %v559
  %604 = vst [vmem:[%s2 + $0x8] sm:$0xff] %v560
  %605 = vst [vmem:[%s2 + $0x10] sm:$0xff] %v561
  %606 = vst [vmem:[%s2 + $0x18] sm:$0xff] %v562
  %607 = vst [vmem:[%s2 + $0x20] sm:$0xff] %v563
  %608 = vst [vmem:[%s2 + $0x28] sm:$0xff] %v564
  %609 = vst [vmem:[%s2 + $0x30] sm:$0xff] %v565
  %610 = vst [vmem:[%s2 + $0x38] sm:$0xff] %v566
  %611 = vst [vmem:[%s2 + $0x40] sm:$0xff] %v567
  %612 = vst [vmem:[%s2 + $0x48] sm:$0xff] %v568
  %613 = vst [vmem:[%s2 + $0x50] sm:$0xff] %v569
  %614 = vst [vmem:[%s2 + $0x58] sm:$0xff] %v570
  %615 = vst [vmem:[%s2 + $0x60] sm:$0xff] %v571
  %616 = vst [vmem:[%s2 + $0x68] sm:$0xff] %v572
  %617 = vst [vmem:[%s2 + $0x70] sm:$0xff] %v573
  %618 = vst [vmem:[%s2 + $0x78] sm:$0xff] %v574
  %619 = vst [vmem:[%s2 + $0x80] sm:$0xff] %v575
  %620 = vst [vmem:[%s2 + $0x88] sm:$0xff] %v576
  %621 = vst [vmem:[%s2 + $0x90] sm:$0xff] %v577
  %622 = vst [vmem:[%s2 + $0x98] sm:$0xff] %v578
  %623 = vst [vmem:[%s2 + $0xa0] sm:$0xff] %v579
  %624 = vst [vmem:[%s2 + $0xa8] sm:$0xff] %v580
  %625 = vst [vmem:[%s2 + $0xb0] sm:$0xff] %v581
  %626 = vst [vmem:[%s2 + $0xb8] sm:$0xff] %v582
  %627 = vst [vmem:[%s2 + $0xc0] sm:$0xff] %v583
  %628 = vst [vmem:[%s2 + $0xc8] sm:$0xff] %v584
  %629 = vst [vmem:[%s2 + $0xd0] sm:$0xff] %v585
  %630 = vst [vmem:[%s2 + $0xd8] sm:$0xff] %v586
  %631 = vst [vmem:[%s2 + $0xe0] sm:$0xff] %v587
  %632 = vst [vmem:[%s2 + $0xe8] sm:$0xff] %v588
  %633 = vst [vmem:[%s2 + $0xf0] sm:$0xff] %v589
  %634 = vst [vmem:[%s2 + $0xf8] sm:$0xff] %v590
  %635 = vst [vmem:[%s2 + $0x100] sm:$0xff] %v591
  %636 = vst [vmem:[%s2 + $0x108] sm:$0xff] %v592
  %637 = vst [vmem:[%s2 + $0x110] sm:$0xff] %v593
  %638 = vst [vmem:[%s2 + $0x118] sm:$0xff] %v594
  %639 = vst [vmem:[%s2 + $0x120] sm:$0xff] %v595
  %640 = vst [vmem:[%s2 + $0x128] sm:$0xff] %v596
  %641 = vst [vmem:[%s2 + $0x130] sm:$0xff] %v597
  %642 = vst [vmem:[%s2 + $0x138] sm:$0xff] %v598
  %643 = vst [vmem:[%s2 + $0x140] sm:$0xff] %v599
  %644 = vst [vmem:[%s2 + $0x148] sm:$0xff] %v600
  %645 = vst [vmem:[%s2 + $0x150] sm:$0x1f] %v601
  %646 = vst [vmem:[%s2 + $0x158] sm:$0x1f] %v602
  // Predicated region
  $region10: #{conv1x1_relu.1} parent=0 // pred_check
    _
  $region11: #{conv1x1_relu.1} parent=0 // pred_check_branch
    %648 = sbr.rel (0) target = $region13
  $region12: #{conv1x1_relu.1} parent=0 // pred_region
    _
  $region13: #{conv1x1_relu.1} parent=0 // pred_fallthru
    _
  // Predicated region
  $region14: #{conv1x1_relu.1} parent=0 // pred_check
    _
  $region15: #{conv1x1_relu.1} parent=0 // pred_check_branch
    %650 = sbr.rel (0) target = $region17
  $region16: #{conv1x1_relu.1} parent=0 // pred_region
    _
  $region17: #{conv1x1_relu.1} parent=0 // pred_fallthru
    _

</llo_original>
